<compile_context>
chip_gen: v7x
topology: tpu7x:2x2x1
jax: 0.10.0
libtpu: 0.0.40
codegen_flags: <defaults>
</compile_context>

<pallas_src>
import jax
import jax.numpy as jnp
from jax.experimental import pallas as pl
from jax.experimental.pallas import tpu as pltpu

_LANES = 128
_SUBLANES = 8


def _affine_kernel(w_ref, b_ref, x_ref, o_ref):
    # Pure VPU multiply-add on a lane-dense slab; w/b come from SMEM and are
    # splatted across the vreg. No MXU, no masked stores, no dtype cast.
    o_ref[...] = x_ref[...] * w_ref[0] + b_ref[0]


def linear_forward(x, w, b, *, block_rows=512):
    """nn.Linear(1, 1) forward: y = x @ W + b  (here just x * w + b).

    x: (N, 1) f32, w: (1, 1) f32 (transpose of PyTorch's (1, 1) weight),
    b: (1,) f32.  Returns (N, 1) f32.
    """
    n = x.shape[0]
    dtype = x.dtype

    # Lay the batch along the 128-lane axis: pad N up to a multiple of
    # 8*128 so the slab is whole (8,128) vregs, then reshape to (rows, 128).
    slab = _LANES * _SUBLANES
    n_pad = ((n + slab - 1) // slab) * slab
    rows = n_pad // _LANES

    # Tile the sublane axis for large N; a whole-array block otherwise.
    block_rows = min(block_rows, rows)
    if rows % block_rows:
        n_pad += (block_rows - rows % block_rows) * _LANES
        rows = n_pad // _LANES
    grid = (rows // block_rows,)

    x_slab = jnp.pad(x.reshape(-1), (0, n_pad - n)).reshape(rows, _LANES)
    w_s = w.reshape(1).astype(dtype)   # SMEM scalar
    b_s = b.reshape(1).astype(dtype)   # SMEM scalar

    y_slab = pl.pallas_call(
        _affine_kernel,
        out_shape=jax.ShapeDtypeStruct((rows, _LANES), dtype),
        grid=grid,
        in_specs=[
            pl.BlockSpec(memory_space=pltpu.MemorySpace.SMEM),          # w
            pl.BlockSpec(memory_space=pltpu.MemorySpace.SMEM),          # b
            pl.BlockSpec((block_rows, _LANES), lambda i: (i, 0)),       # x slab
        ],
        out_specs=pl.BlockSpec((block_rows, _LANES), lambda i: (i, 0)),
        compiler_params=pltpu.CompilerParams(
            dimension_semantics=("parallel",)),
    )(w_s, b_s, x_slab)

    # Drop the padded tail and restore the (N, 1) layout outside the kernel.
    return y_slab.reshape(-1)[:n].reshape(n, 1)


class LinearRegressionModelPallas:
    """Mirrors nn.Linear(1, 1): deterministic in-script parameter init."""

    def __init__(self, key):
        d_in, d_out = 1, 1
        kw, kb = jax.random.split(key)
        # nn.Linear default init: U(-1/sqrt(fan_in), 1/sqrt(fan_in)); fan_in=1.
        bound = 1.0
        # Stored as (D_in, D_out) == transpose of PyTorch's (D_out, D_in).
        self.w = jax.random.uniform(
            kw, (d_in, d_out), jnp.float32, minval=-bound, maxval=bound
        )
        self.b = jax.random.uniform(
            kb, (d_out,), jnp.float32, minval=-bound, maxval=bound
        )

    def __call__(self, x):
        return linear_forward(x, self.w, self.b)


if __name__ == "__main__":
    key = jax.random.PRNGKey(0)

    # Same input as the reference script: x = torch.linspace(0, 10, 100).reshape(-1, 1)
    x = jnp.linspace(0.0, 10.0, 100, dtype=jnp.float32).reshape(-1, 1)

    model = LinearRegressionModelPallas(key)
    y = model(x)
    jax.block_until_ready(y)

    # Sanity check against plain-JAX reference of the same forward pass.
    y_ref = x @ model.w + model.b
    assert y.shape == (100, 1)
    assert jnp.allclose(y, y_ref, atol=1e-5, rtol=1e-5)

    print("KERNEL_OK")
</pallas_src>

<mosaic_0001>
module attributes {stable_mosaic.version = 11 : i64} {
  func.func @_affine_kernel(%arg0: i32, %arg1: memref<1xf32, #tpu.memory_space<smem>>, %arg2: memref<1xf32, #tpu.memory_space<smem>>, %arg3: memref<8x128xf32, #tpu.memory_space<vmem>>, %arg4: memref<8x128xf32, #tpu.memory_space<vmem>>) attributes {dimension_semantics = [#tpu.dimension_semantics<parallel>], iteration_bounds = array<i64: 1>, scalar_prefetch = 0 : i64, scratch_operands = 0 : i64, tpu.core_type = #tpu.core_type<tc>, window_params = [{transform_indices = @transform_0, window_bounds = array<i64: 1>}, {transform_indices = @transform_1, window_bounds = array<i64: 1>}, {transform_indices = @transform_2, window_bounds = array<i64: 8, 128>}, {transform_indices = @transform_3, window_bounds = array<i64: 8, 128>}]} {
    %c0 = arith.constant 0 : index
    %c0_0 = arith.constant 0 : index
    %0 = vector.load %arg3[%c0, %c0_0] : memref<8x128xf32, #tpu.memory_space<vmem>>, vector<8x128xf32>
    %c0_1 = arith.constant 0 : index
    %1 = memref.load %arg1[%c0_1] : memref<1xf32, #tpu.memory_space<smem>>
    %2 = vector.broadcast %1 : f32 to vector<8x128xf32>
    %3 = arith.mulf %0, %2 : vector<8x128xf32>
    %c0_2 = arith.constant 0 : index
    %4 = memref.load %arg2[%c0_2] : memref<1xf32, #tpu.memory_space<smem>>
    %5 = vector.broadcast %4 : f32 to vector<8x128xf32>
    %6 = arith.addf %3, %5 : vector<8x128xf32>
    %c0_3 = arith.constant 0 : index
    %c0_4 = arith.constant 0 : index
    %7 = vector.load %arg4[%c0_3, %c0_4] : memref<8x128xf32, #tpu.memory_space<vmem>>, vector<8x128xf32>
    tpu.vector_store %arg4[%c0_3, %c0_4], %6 {strides = array<i32>} : memref<8x128xf32, #tpu.memory_space<vmem>>, vector<8x128xf32>,
    return
  }
  func.func @transform_0(%arg0: i32) -> i32 {
    %c0_i32 = arith.constant 0 : i32
    %c0_i32_0 = arith.constant 0 : i32
    return %c0_i32 : i32
  }
  func.func @transform_1(%arg0: i32) -> i32 {
    %c0_i32 = arith.constant 0 : i32
    %c0_i32_0 = arith.constant 0 : i32
    return %c0_i32 : i32
  }
  func.func @transform_2(%arg0: i32) -> (i32, i32) {
    %c0_i32 = arith.constant 0 : i32
    %c0_i32_0 = arith.constant 0 : i32
    return %arg0, %c0_i32 : i32, i32
  }
  func.func @transform_3(%arg0: i32) -> (i32, i32) {
    %c0_i32 = arith.constant 0 : i32
    %c0_i32_0 = arith.constant 0 : i32
    return %arg0, %c0_i32 : i32, i32
  }
}

</mosaic_0001>

<llo_original>
// kernel: tpu_custom_call.1
$region0: #{tpu_custom_call.1}
  #allocation0 [shape = 'u32[]', space=smem, size = 0x4, offset = 0x4, fixed_abs, tag = 'smem constant byte address 0x4 - core index']
  #allocation1 [shape = 'u32[144,128]{1,0:T(1,128)}', space=vmem, size = 0x12000, scoped, tag = 'internal scratch']
  #allocation2 [shape = 'f32[1]{0:T(128)S(6)}', space=smem, size = 0x200, scoped, tag = 'scoped memory for tpu_custom_call.1']
  #allocation3 [shape = 'f32[1]{0:T(128)S(6)}', space=smem, size = 0x200, scoped, tag = 'scoped memory for tpu_custom_call.1']
  %s0 = inlined_call_operand.<no memory space> [shape: f32[1], index: 0, kind: input, shape index: {}]
  %s1 = inlined_call_operand.<no memory space> [shape: f32[1], index: 1, kind: input, shape index: {}]
  %s2 = inlined_call_operand.hbm [shape: f32[8,128], index: 2, kind: input, shape index: {}]
  %s3 = inlined_call_operand.hbm [shape: f32[8,128], index: 3, kind: output, shape index: {}]
  %s4 = sld [smem:[#allocation0]]
  $region26: #{tpu_custom_call.1} parent=0
    _
  %s6 = ssub.s32 1, %s4
  %s7 = scalar_select 0, %s6, %s4
  %8 = sst [smem:[#allocation2]] %s0
  %9 = sst [smem:[#allocation3]] %s1
  $region1: #{tpu_custom_call.1} parent=0
    #allocation4 [shape = 'u8[4096]{0}', space=vmem, size = 0x1000, scoped, tag = 'input window, operand 2, single buffered']
    #allocation5 [shape = 's32[1]{0}', space=sflag, size = 0x4, scoped, tag = 'scoped memory for tpu_custom_call.1']
    #allocation6 [shape = 's32[1]{0}', space=sflag, size = 0x4, scoped, tag = 'scoped memory for tpu_custom_call.1']
    #allocation7 [shape = 'u8[4096]{0}', space=vmem, size = 0x1000, scoped, tag = 'output window, operand 0, single buffered']
    %10 = vsyncpa [#allocation5], 0
    %11 = vsyncpa [#allocation6], 0
    // Predicated region
    $region2: #{tpu_custom_call.1} parent=1 // pred_check
      _
    $region3: #{tpu_custom_call.1} parent=1 // pred_check_branch
      %13 = sbr.rel (0) target = $region5
    $region4: #{tpu_custom_call.1} parent=1 // pred_region
      _
    $region5: #{tpu_custom_call.1} parent=1 // pred_fallthru
      _
    // Predicated region
    $region6: #{tpu_custom_call.1} parent=1 // pred_check
      _
    $region7: #{tpu_custom_call.1} parent=1 // pred_check_branch
      %15 = sbr.rel (0) target = $region9
    $region8: #{tpu_custom_call.1} parent=1 // pred_region
      _
    $region9: #{tpu_custom_call.1} parent=1 // pred_fallthru
      _
    // Predicated region
    $region10: #{tpu_custom_call.1} parent=1 // pred_check
      _
    $region11: #{tpu_custom_call.1} parent=1 // pred_check_branch
      %17 = sbr.rel (0) target = $region13
    $region12: #{tpu_custom_call.1} parent=1 // pred_region
      %s19 = ssub.s32 128, 128
      %20 = vsyncadd [#allocation5], %s19
      %s22 = sshll.u32 [#allocation4], 4
      %s23 = int_to_ptr.vmem [resolvable:$true] %s22
      %25 = dma.hbm_to_vmem [thread:$0]  %s2, 128, %s23, [#allocation5]
    $region13: #{tpu_custom_call.1} parent=1 // pred_fallthru
      _
    // Predicated region
    $region14: #{tpu_custom_call.1} parent=1 // pred_check
      _
    $region15: #{tpu_custom_call.1} parent=1 // pred_check_branch
      %27 = sbr.rel (0) target = $region17
    $region16: #{tpu_custom_call.1} parent=1 // pred_region
      %28 = dma.done [#allocation5], 128
    $region17: #{tpu_custom_call.1} parent=1 // pred_fallthru
      _
    %v29 = vld [vmem:[#allocation4] sm:$0xff]
    %s30 = sld [smem:[#allocation2]]
    %v31 = vstv %s30
    %v32 = vmul.f32 %v29, %v31
    %s33 = sld [smem:[#allocation3]]
    %v34 = vstv %s33
    %v35 = vadd.f32 %v32, %v34
    %36 = vst [vmem:[#allocation7] sm:$0xff] %v35
    // Predicated region
    $region18: #{tpu_custom_call.1} parent=1 // pred_check
      _
    $region19: #{tpu_custom_call.1} parent=1 // pred_check_branch
      %38 = sbr.rel (0) target = $region21
    $region20: #{tpu_custom_call.1} parent=1 // pred_region
      %s40 = ssub.s32 128, 128
      %41 = vsyncadd [#allocation6], %s40
      %s43 = sshll.u32 [#allocation7], 4
      %s44 = int_to_ptr.vmem [resolvable:$true] %s43
      %46 = dma.vmem_to_hbm [thread:$0]  %s44, 128, %s3, [#allocation6]
    $region21: #{tpu_custom_call.1} parent=1 // pred_fallthru
      _
    // Predicated region
    $region22: #{tpu_custom_call.1} parent=1 // pred_check
      _
    $region23: #{tpu_custom_call.1} parent=1 // pred_check_branch
      %48 = sbr.rel (0) target = $region25
    $region24: #{tpu_custom_call.1} parent=1 // pred_region
      %49 = dma.done [#allocation6], 128
    $region25: #{tpu_custom_call.1} parent=1 // pred_fallthru
      _
    %50 = vsyncpa [#allocation5], 1
    %51 = vsyncpa [#allocation6], 1

</llo_original>
